<compile_context>
chip_gen: v7x
topology: tpu7x:2x2x1
jax: 0.10.0
libtpu: 0.0.40
codegen_flags: <defaults>
</compile_context>

<pallas_src>
import functools

import jax
import jax.numpy as jnp
from jax.experimental import pallas as pl
from jax.experimental.pallas import tpu as pltpu


def build_grid(resolution):
    """JAX port of the torch build_grid (torch.meshgrid default indexing='ij')."""
    ranges = [jnp.linspace(0.0, 1.0, num=res, dtype=jnp.float32) for res in resolution]
    grid = jnp.meshgrid(*ranges, indexing="ij")
    grid = jnp.stack(grid, axis=-1)                        # (H, W, 2)
    grid = grid.reshape(resolution[0], resolution[1], -1)  # (H, W, 2)
    grid = grid[None]                                      # (1, H, W, 2)
    grid = jnp.concatenate([grid, 1.0 - grid], axis=-1)    # (1, H, W, 4)
    return grid


# ---------------------------------------------------------------------------
# Kernel: streaming add of a (resident) position-embedding slab, lane-dense.
# ---------------------------------------------------------------------------

def _add_pos_kernel(pos_ref, x_ref, o_ref):
    # pos_ref: (TR, 128); x_ref/o_ref: (TB, TR, 128). Last dim = 128 lanes,
    # so stores are full-width unmasked vst.
    o_ref[...] = (x_ref[...] + pos_ref[...][None, :, :]).astype(o_ref.dtype)


# ---------------------------------------------------------------------------
# Tiling helpers
# ---------------------------------------------------------------------------

def _round_up(x, m):
    return ((x + m - 1) // m) * m


def _pick_tiles(B, R, itemsize, target_block_bytes=2 << 20):
    """Pick (TB, TR, num_b, num_r): ~target_block_bytes of x per grid step.

    TR is a multiple of the dtype's sublane pack; the batch dim is blocked
    (TB > 1) when the per-batch row slab alone is too small to reach the
    target. Grid sizes are cdiv-based; the wrapper pads arrays to match.
    """
    sub = max(8, 32 // itemsize)                 # sublane pack: f32 8, bf16 16, int8 32
    row_bytes = 128 * itemsize
    target_rows = max(sub, (target_block_bytes // row_bytes) // sub * sub)

    if R >= target_rows:
        TB, TR = 1, target_rows
    else:
        TR = _round_up(R, sub)
        TB = max(1, min(B, target_rows // TR))

    num_r = pl.cdiv(R, TR)
    num_b = pl.cdiv(B, TB)

    # Make sure a v7x chip (2 TensorCores) has >= 2 parallel blocks to shard.
    if num_r * num_b == 1:
        if TR >= 2 * sub:
            TR = _round_up(pl.cdiv(TR, 2), sub)
            num_r = pl.cdiv(R, TR)
        elif TB >= 2:
            TB = pl.cdiv(TB, 2)
            num_b = pl.cdiv(B, TB)
    return TB, TR, num_b, num_r


# ---------------------------------------------------------------------------
# Wrapper
# ---------------------------------------------------------------------------

@functools.partial(jax.jit, static_argnames=("resolution",), donate_argnums=(0,))
def soft_position_embed(inputs_nhwc, weight, bias, resolution):
    """inputs_nhwc: (B, H, W, D); weight: (D, 4) (torch Linear layout); bias: (D,)."""
    B, H, W, D = inputs_nhwc.shape
    total = H * W * D
    dtype = inputs_nhwc.dtype
    itemsize = jnp.dtype(dtype).itemsize

    # Position embedding computed ONCE by XLA (tiny K=4 matmul, terrible MXU
    # utilization in-kernel), then cast to the input dtype to halve DMA bytes.
    grid_vals = build_grid(resolution).reshape(H * W, 4)                        # (HW, 4)
    pos = (grid_vals @ weight.astype(jnp.float32).T + bias.astype(jnp.float32))  # (HW, D) f32
    pos = pos.astype(dtype)

    # Flatten each batch slab to rows of 128 lanes; pad so the grid divides.
    R = pl.cdiv(total, 128)
    TB, TR, num_b, num_r = _pick_tiles(B, R, itemsize)
    R_pad = num_r * TR
    B_pad = num_b * TB
    flat_pad = R_pad * 128

    x_flat = inputs_nhwc.reshape(B, total)
    pos_flat = pos.reshape(total)
    if flat_pad != total:
        x_flat = jnp.pad(x_flat, ((0, 0), (0, flat_pad - total)))
        pos_flat = jnp.pad(pos_flat, (0, flat_pad - total))
    if B_pad != B:
        x_flat = jnp.pad(x_flat, ((0, B_pad - B), (0, 0)))

    x3 = x_flat.reshape(B_pad, R_pad, 128)
    pos2 = pos_flat.reshape(R_pad, 128)

    # VMEM budget: x in (2 bufs) + out (2 bufs) + pos (2 bufs) + slack.
    block_bytes = TB * TR * 128 * itemsize
    pos_bytes = TR * 128 * itemsize
    vmem_limit = min(64 * 1024 * 1024,
                     max(16 * 1024 * 1024,
                         4 * block_bytes + 2 * pos_bytes + (2 << 20)))

    out = pl.pallas_call(
        _add_pos_kernel,
        out_shape=jax.ShapeDtypeStruct((B_pad, R_pad, 128), dtype),
        grid_spec=pltpu.PrefetchScalarGridSpec(
            num_scalar_prefetch=0,
            grid=(num_r, num_b),  # rows outer, batch inner -> pos block stays resident
            in_specs=[
                pl.BlockSpec((TR, 128), lambda r, b: (r, 0)),          # pos
                pl.BlockSpec((TB, TR, 128), lambda r, b: (b, r, 0)),   # x
            ],
            out_specs=pl.BlockSpec((TB, TR, 128), lambda r, b: (b, r, 0)),
        ),
        input_output_aliases={1: 0},  # alias x -> out (x is donated at the jit boundary)
        compiler_params=pltpu.CompilerParams(
            dimension_semantics=("parallel", "parallel"),
            vmem_limit_bytes=int(vmem_limit)),
    )(pos2, x3)

    out = out.reshape(B_pad, flat_pad)[:B, :total]
    return out.reshape(B, H, W, D)


def reference(inputs_nhwc, weight, bias, resolution):
    grid = build_grid(resolution)                            # (1, H, W, 4)
    pos = jnp.einsum("bhwk,dk->bhwd", grid, weight) + bias   # dense(grid)
    return inputs_nhwc + pos


if __name__ == "__main__":
    key = jax.random.PRNGKey(0)
    k_x, k_w, k_b = jax.random.split(key, 3)

    B, H, W, D = 2, 16, 16, 32
    resolution = (H, W)

    x = jax.random.normal(k_x, (B, H, W, D), dtype=jnp.float32)
    # deterministic "learnable" params (torch Linear(4, D): weight (D,4), bias (D,))
    weight = jax.random.normal(k_w, (D, 4), dtype=jnp.float32) * 0.5
    bias = jax.random.normal(k_b, (D,), dtype=jnp.float32) * 0.1

    # Compute the reference BEFORE the kernel call (x is donated to the kernel).
    ref = reference(x, weight, bias, resolution)

    out = soft_position_embed(x, weight, bias, resolution)
    out = jax.block_until_ready(out)

    assert out.shape == (B, H, W, D)
    assert jnp.allclose(out, ref, atol=1e-5, rtol=1e-5), "mismatch vs reference"

    print("KERNEL_OK")
</pallas_src>

<mosaic_0001>
module attributes {stable_mosaic.version = 11 : i64} {
  func.func @_add_pos_kernel(%arg0: i32, %arg1: i32, %arg2: memref<32x128xf32, #tpu.memory_space<vmem>>, %arg3: memref<2x32x128xf32, #tpu.memory_space<vmem>>, %arg4: memref<2x32x128xf32, #tpu.memory_space<vmem>>) attributes {dimension_semantics = [#tpu.dimension_semantics<parallel>, #tpu.dimension_semantics<parallel>], iteration_bounds = array<i64: 2, 1>, scalar_prefetch = 0 : i64, scratch_operands = 0 : i64, tpu.core_type = #tpu.core_type<tc>, window_params = [{transform_indices = @transform_0, window_bounds = array<i64: 32, 128>}, {transform_indices = @transform_1, window_bounds = array<i64: 2, 32, 128>}, {transform_indices = @transform_2, window_bounds = array<i64: 2, 32, 128>}]} {
    %c0 = arith.constant 0 : index
    %c0_0 = arith.constant 0 : index
    %c0_1 = arith.constant 0 : index
    %0 = vector.load %arg3[%c0, %c0_0, %c0_1] : memref<2x32x128xf32, #tpu.memory_space<vmem>>, vector<2x32x128xf32>
    %c0_2 = arith.constant 0 : index
    %c0_3 = arith.constant 0 : index
    %1 = vector.load %arg2[%c0_2, %c0_3] : memref<32x128xf32, #tpu.memory_space<vmem>>, vector<32x128xf32>
    %2 = vector.shape_cast %1 : vector<32x128xf32> to vector<1x32x128xf32>
    %3 = vector.broadcast %2 : vector<1x32x128xf32> to vector<2x32x128xf32>
    %4 = arith.addf %0, %3 : vector<2x32x128xf32>
    %c0_4 = arith.constant 0 : index
    %c0_5 = arith.constant 0 : index
    %c0_6 = arith.constant 0 : index
    %5 = vector.load %arg4[%c0_4, %c0_5, %c0_6] : memref<2x32x128xf32, #tpu.memory_space<vmem>>, vector<2x32x128xf32>
    tpu.vector_store %arg4[%c0_4, %c0_5, %c0_6], %4 {strides = array<i32>} : memref<2x32x128xf32, #tpu.memory_space<vmem>>, vector<2x32x128xf32>,
    return
  }
  func.func @transform_0(%arg0: i32, %arg1: i32) -> (i32, i32) {
    %c0_i32 = arith.constant 0 : i32
    %c0_i32_0 = arith.constant 0 : i32
    return %arg0, %c0_i32 : i32, i32
  }
  func.func @transform_1(%arg0: i32, %arg1: i32) -> (i32, i32, i32) {
    %c0_i32 = arith.constant 0 : i32
    %c0_i32_0 = arith.constant 0 : i32
    return %arg1, %arg0, %c0_i32 : i32, i32, i32
  }
  func.func @transform_2(%arg0: i32, %arg1: i32) -> (i32, i32, i32) {
    %c0_i32 = arith.constant 0 : i32
    %c0_i32_0 = arith.constant 0 : i32
    return %arg1, %arg0, %c0_i32 : i32, i32, i32
  }
}

</mosaic_0001>

<llo_original>
// kernel: soft_position_embed.1
$region0: #{soft_position_embed.1}
  #allocation0 [shape = 'u32[]', space=smem, size = 0x4, offset = 0x4, fixed_abs, tag = 'smem constant byte address 0x4 - core index']
  #allocation1 [shape = 'u32[144,128]{1,0:T(1,128)}', space=vmem, size = 0x12000, scoped, tag = 'internal scratch']
  %s0 = inlined_call_operand.vmem [shape: f32[64,128], index: 0, kind: input, shape index: {}]
  %s1 = inlined_call_operand.vmem [shape: f32[2,64,128], index: 1, kind: input, shape index: {}, may-alias: {1,2}]
  %s2 = inlined_call_operand.vmem [shape: f32[2,64,128], index: 2, kind: output, shape index: {}, may-alias: {1,2}]
  %s3 = sld [smem:[#allocation0]]
  $region113: #{soft_position_embed.1} parent=0
    _
  %s5 = ssub.s32 1, %s3
  %s6 = scalar_select 0, %s5, %s3
  $region1: #{soft_position_embed.1} parent=0
    #allocation2 [shape = 'u8[65536]{0}', space=vmem, size = 0x10000, scoped, tag = 'input window, operand 1']
    #allocation3 [shape = 'u8[65536]{0}', space=vmem, size = 0x10000, scoped, tag = 'output window, operand 0']
    loop: start=0, step=1, limit=4
    $region2: #{soft_position_embed.1} parent=1 // loop_pre_header
      _
    $region3: #{soft_position_embed.1} parent=1 // loop_header
      %s8 = sphi 0, %s12
      %p9 = scmp.ge.s32.totalorder %s8, 4
      %s15 = sphi 0, %s27
      %s16 = sphi 0, %s23
      %s17 = sphi 0, %s15
      %s18 = sphi 0, %s16
      %s19 = sphi 0, %s17
      %s20 = sphi 0, %s18
      %s30 = sphi 0, %s32
      %s33 = sphi 0, %s30
      %s34 = sphi 0, %s33
      %s50 = sphi 0, %s34
      %s58 = sphi 0, %s60
      %s61 = sphi 0, %s58
      %s62 = sphi 0, %s61
      %s78 = sphi 0, %s62
      %s86 = sphi 0, %s88
      %s89 = sphi 0, %s86
      %s90 = sphi 0, %s89
      %s106 = sphi 0, %s90
    $region4: #{soft_position_embed.1} parent=1 // loop_header_branch
      %11 = sbr.rel (%p9) target = $region8
    $region5: #{soft_position_embed.1} parent=1 // loop_body
      %s13 = ssub.s32 %s8, 1
      %s14 = ssub.s32 %s8, 2
      %s21 = sadd.s32 1, %s16
      %p22 = scmp.ge.s32.totalorder %s21, 1
      %s23 = scalar_select %p22, 0, %s21
      %s24 = sadd.s32 1, %s15
      %s25 = scalar_select %p22, %s24, %s15
      %p26 = scmp.ge.s32.totalorder %s25, 2
      %s27 = scalar_select %p26, 0, %s25
      %s28 = ssub.s32 %s15, %s27
      %p29 = scmp.eq.s32.totalorder %s28, 0
      %s31 = sadd.s32 %s30, 1
      %s32 = scalar_select %p29, %s30, %s31
      %p35 = pneg %p29
      %p36 = scmp.eq.s32.totalorder %s8, 1
      %p37 = por %p35, %p36
      %p38 = scmp.ne.s32.totalorder %s30, %s33
      %p39 = scmp.eq.s32.totalorder %s8, 0
      %p40 = por %p38, %p39
      %p41 = scmp.ne.s32.totalorder %s30, %s33
      %p42 = scmp.eq.s32.totalorder %s13, 1
      %p43 = por %p41, %p42
      %p44 = scmp.ne.s32.totalorder %s33, %s34
      %p45 = scmp.eq.s32.totalorder %s13, 0
      %p46 = por %p44, %p45
      %p47 = scmp.ne.s32.totalorder %s33, %s34
      %p48 = scmp.eq.s32.totalorder %s14, 1
      %p49 = por %p47, %p48
      %p51 = scmp.ne.s32.totalorder %s34, %s50
      %p52 = scmp.eq.s32.totalorder %s14, 0
      %p53 = por %p51, %p52
      %s54 = ssub.s32 %s16, %s23
      %s55 = ssub.s32 %s15, %s27
      %s56 = sor.u32 %s54, %s55
      %p57 = scmp.eq.s32.totalorder %s56, 0
      %s59 = sadd.s32 %s58, 1
      %s60 = scalar_select %p57, %s58, %s59
      %p63 = pneg %p57
      %p64 = scmp.eq.s32.totalorder %s8, 1
      %p65 = por %p63, %p64
      %p66 = scmp.ne.s32.totalorder %s58, %s61
      %p67 = scmp.eq.s32.totalorder %s8, 0
      %p68 = por %p66, %p67
      %p69 = scmp.ne.s32.totalorder %s58, %s61
      %p70 = scmp.eq.s32.totalorder %s13, 1
      %p71 = por %p69, %p70
      %p72 = scmp.ne.s32.totalorder %s61, %s62
      %p73 = scmp.eq.s32.totalorder %s13, 0
      %p74 = por %p72, %p73
      %p75 = scmp.ne.s32.totalorder %s61, %s62
      %p76 = scmp.eq.s32.totalorder %s14, 1
      %p77 = por %p75, %p76
      %p79 = scmp.ne.s32.totalorder %s62, %s78
      %p80 = scmp.eq.s32.totalorder %s14, 0
      %p81 = por %p79, %p80
      %s82 = ssub.s32 %s16, %s23
      %s83 = ssub.s32 %s15, %s27
      %s84 = sor.u32 %s82, %s83
      %p85 = scmp.eq.s32.totalorder %s84, 0
      %s87 = sadd.s32 %s86, 1
      %s88 = scalar_select %p85, %s86, %s87
      %p91 = pneg %p85
      %p92 = scmp.eq.s32.totalorder %s8, 1
      %p93 = por %p91, %p92
      %p94 = scmp.ne.s32.totalorder %s86, %s89
      %p95 = scmp.eq.s32.totalorder %s8, 0
      %p96 = por %p94, %p95
      %p97 = scmp.ne.s32.totalorder %s86, %s89
      %p98 = scmp.eq.s32.totalorder %s13, 1
      %p99 = por %p97, %p98
      %p100 = scmp.ne.s32.totalorder %s89, %s90
      %p101 = scmp.eq.s32.totalorder %s13, 0
      %p102 = por %p100, %p101
      %p103 = scmp.ne.s32.totalorder %s89, %s90
      %p104 = scmp.eq.s32.totalorder %s14, 1
      %p105 = por %p103, %p104
      %p107 = scmp.ne.s32.totalorder %s90, %s106
      %p108 = scmp.eq.s32.totalorder %s14, 0
      %p109 = por %p107, %p108
      %p110 = scmp.le.s32.totalorder 1, %s8
      %p111 = scmp.lt.s32.totalorder %s8, 3
      %p112 = pnand %p110, %p111
      %p113 = pneg %p112
      // Predicated region
      $region9: #{soft_position_embed.1} parent=5 // pred_check
        _
      $region10: #{soft_position_embed.1} parent=5 // pred_check_branch
        %115 = sbr.rel (%p112) target = $region12
      $region11: #{soft_position_embed.1} parent=5 // pred_region
        %s116 = ssub.s32 %s8, 1
      $region12: #{soft_position_embed.1} parent=5 // pred_fallthru
        _
      %p117 = scmp.lt.s32.totalorder %s8, 2
      // Predicated region
      $region13: #{soft_position_embed.1} parent=5 // pred_check
        %p118 = pneg %p117
      $region14: #{soft_position_embed.1} parent=5 // pred_check_branch
        %120 = sbr.rel (%p118) target = $region16
      $region15: #{soft_position_embed.1} parent=5 // pred_region
        // Predicated region
        $region17: #{soft_position_embed.1} parent=15 // pred_check
          %p121 = pneg %p40
        $region18: #{soft_position_embed.1} parent=15 // pred_check_branch
          %123 = sbr.rel (%p121) target = $region20
        $region19: #{soft_position_embed.1} parent=15 // pred_region
          %s124 = smul.u32 4, %s15
          %p125 = scmp.lt.s32.totalorder %s124, 7
          %s126 = scalar_select %p125, %s124, 7
          %s127 = smul.addr %s126, 8
          %s128 = scalar_lea.vmem %s0, %s127
          %s129 = smul.u32 4, %s15
        $region20: #{soft_position_embed.1} parent=15 // pred_fallthru
          _
        // Predicated region
        $region21: #{soft_position_embed.1} parent=15 // pred_check
          %p130 = pneg %p68
        $region22: #{soft_position_embed.1} parent=15 // pred_check_branch
          %132 = sbr.rel (%p130) target = $region24
        $region23: #{soft_position_embed.1} parent=15 // pred_region
          %s133 = sand.u32 %s58, 1
          %s134 = sand.u32 %s58, 1
          %s135 = smul.addr %s134, 64
          %s136 = scalar_lea.vmem [#allocation2], %s135
          %s137 = smul.u32 2, %s16
          %s138 = smul.u32 4, %s15
          %s139 = smul.addr %s137, 8
          %s140 = sadd.s32 %s138, %s139
          %s141 = smul.addr %s140, 8
          %s142 = scalar_lea.vmem %s1, %s141
          // Predicated region
          $region25: #{soft_position_embed.1} parent=23 // pred_check
            _
          $region26: #{soft_position_embed.1} parent=23 // pred_check_branch
            %144 = sbr.rel (0) target = $region28
          $region27: #{soft_position_embed.1} parent=23 // pred_region
            // Predicated region
            $region29: #{soft_position_embed.1} parent=27 // pred_check
              _
            $region30: #{soft_position_embed.1} parent=27 // pred_check_branch
              %146 = sbr.rel (0) target = $region32
            $region31: #{soft_position_embed.1} parent=27 // pred_region
              // Predicated region
              $region44: #{soft_position_embed.1} parent=31 // pred_check
                _
              $region45: #{soft_position_embed.1} parent=31 // pred_check_branch
                %175 = sbr.rel (0) target = $region47
              $region46: #{soft_position_embed.1} parent=31 // pred_region
                loop: start=0, step=1, limit=1
                $region48: #{soft_position_embed.1} parent=46 // loop_pre_header
                  _
                $region49: #{soft_position_embed.1} parent=46 // loop_header
                  %s177 = sphi 0, %s181
                  %p178 = scmp.ge.s32.totalorder %s177, 1
                  %s182 = sphi %s142, %s142
                  %s183 = sphi %s136, %s136
                $region50: #{soft_position_embed.1} parent=46 // loop_header_branch
                  %180 = sbr.rel (%p178) target = $region54
                $region51: #{soft_position_embed.1} parent=46 // loop_body
                  %v184 = vld [vmem:[%s182] sm:$0xff]
                  %185 = vst [vmem:[%s183] sm:$0xff] %v184
                  %v186 = vld [vmem:[%s182 + $0x8] sm:$0xff]
                  %187 = vst [vmem:[%s183 + $0x8] sm:$0xff] %v186
                  %v188 = vld [vmem:[%s182 + $0x10] sm:$0xff]
                  %189 = vst [vmem:[%s183 + $0x10] sm:$0xff] %v188
                  %v190 = vld [vmem:[%s182 + $0x18] sm:$0xff]
                  %191 = vst [vmem:[%s183 + $0x18] sm:$0xff] %v190
                  %v192 = vld [vmem:[%s182 + $0x40] sm:$0xff]
                  %193 = vst [vmem:[%s183 + $0x20] sm:$0xff] %v192
                  %v194 = vld [vmem:[%s182 + $0x48] sm:$0xff]
                  %195 = vst [vmem:[%s183 + $0x28] sm:$0xff] %v194
                  %v196 = vld [vmem:[%s182 + $0x50] sm:$0xff]
                  %197 = vst [vmem:[%s183 + $0x30] sm:$0xff] %v196
                  %v198 = vld [vmem:[%s182 + $0x58] sm:$0xff]
                  %199 = vst [vmem:[%s183 + $0x38] sm:$0xff] %v198
                $region52: #{soft_position_embed.1} parent=46 // loop_footer
                  %s181 = sadd.s32 1, %s177
                $region53: #{soft_position_embed.1} parent=46 // loop_footer_branch
                  %176 = sbr.rel target = $region49
                $region54: #{soft_position_embed.1} parent=46 // loop_exit
                  _
              $region47: #{soft_position_embed.1} parent=31 // pred_fallthru
                _
              // Predicated region
              $region55: #{soft_position_embed.1} parent=31 // pred_check
                _
              $region56: #{soft_position_embed.1} parent=31 // pred_check_branch
                %201 = sbr.rel target = $region58
              $region57: #{soft_position_embed.1} parent=31 // pred_region
                _
              $region58: #{soft_position_embed.1} parent=31 // pred_fallthru
                _
            $region32: #{soft_position_embed.1} parent=27 // pred_fallthru
              _
            // Predicated region
            $region33: #{soft_position_embed.1} parent=27 // pred_check
              _
            $region34: #{soft_position_embed.1} parent=27 // pred_check_branch
              %148 = sbr.rel target = $region36
            $region35: #{soft_position_embed.1} parent=27 // pred_region
              loop: start=0, step=1, limit=1
              $region37: #{soft_position_embed.1} parent=35 // loop_pre_header
                _
              $region38: #{soft_position_embed.1} parent=35 // loop_header
                %s151 = sphi 0, %s155
                %p152 = scmp.ge.s32.totalorder %s151, 1
                %s156 = sphi %s142, %s142
                %s157 = sphi %s136, %s136
              $region39: #{soft_position_embed.1} parent=35 // loop_header_branch
                %154 = sbr.rel (%p152) target = $region43
              $region40: #{soft_position_embed.1} parent=35 // loop_body
                %v158 = vld [vmem:[%s156] sm:$0xff]
                %159 = vst [vmem:[%s157] sm:$0xff] %v158
                %v160 = vld [vmem:[%s156 + $0x8] sm:$0xff]
                %161 = vst [vmem:[%s157 + $0x8] sm:$0xff] %v160
                %v162 = vld [vmem:[%s156 + $0x10] sm:$0xff]
                %163 = vst [vmem:[%s157 + $0x10] sm:$0xff] %v162
                %v164 = vld [vmem:[%s156 + $0x18] sm:$0xff]
                %165 = vst [vmem:[%s157 + $0x18] sm:$0xff] %v164
                %v166 = vld [vmem:[%s156 + $0x40] sm:$0xff]
                %167 = vst [vmem:[%s157 + $0x20] sm:$0xff] %v166
                %v168 = vld [vmem:[%s156 + $0x48] sm:$0xff]
                %169 = vst [vmem:[%s157 + $0x28] sm:$0xff] %v168
                %v170 = vld [vmem:[%s156 + $0x50] sm:$0xff]
                %171 = vst [vmem:[%s157 + $0x30] sm:$0xff] %v170
                %v172 = vld [vmem:[%s156 + $0x58] sm:$0xff]
                %173 = vst [vmem:[%s157 + $0x38] sm:$0xff] %v172
              $region41: #{soft_position_embed.1} parent=35 // loop_footer
                %s155 = sadd.s32 1, %s151
              $region42: #{soft_position_embed.1} parent=35 // loop_footer_branch
                %150 = sbr.rel target = $region38
              $region43: #{soft_position_embed.1} parent=35 // loop_exit
                _
            $region36: #{soft_position_embed.1} parent=27 // pred_fallthru
              _
          $region28: #{soft_position_embed.1} parent=23 // pred_fallthru
            _
          %202 = vnop
        $region24: #{soft_position_embed.1} parent=15 // pred_fallthru
          _
      $region16: #{soft_position_embed.1} parent=5 // pred_fallthru
        _
      %p203 = scmp.le.s32.totalorder 1, %s8
      %p204 = scmp.lt.s32.totalorder %s8, 3
      %p205 = pnand %p203, %p204
      %p206 = pneg %p205
      // Predicated region
      $region59: #{soft_position_embed.1} parent=5 // pred_check
        _
      $region60: #{soft_position_embed.1} parent=5 // pred_check_branch
        %208 = sbr.rel (%p205) target = $region62
      $region61: #{soft_position_embed.1} parent=5 // pred_region
        %s209 = ssub.s32 %s8, 1
        %s210 = sand.u32 %s61, 1
        %s211 = sand.u32 %s61, 1
        %s212 = smul.addr %s211, 64
        %s213 = scalar_lea.vmem [#allocation2], %s212
        // Predicated region
        $region63: #{soft_position_embed.1} parent=61 // pred_check
          %p214 = pneg %p74
        $region64: #{soft_position_embed.1} parent=61 // pred_check_branch
          %216 = sbr.rel (%p214) target = $region66
        $region65: #{soft_position_embed.1} parent=61 // pred_region
          _
        $region66: #{soft_position_embed.1} parent=61 // pred_fallthru
          _
        %s217 = smul.u32 4, %s17
        %p218 = scmp.lt.s32.totalorder %s217, 7
        %s219 = scalar_select %p218, %s217, 7
        %s220 = smul.addr %s219, 8
        %s221 = scalar_lea.vmem %s0, %s220
        %p222 = pneg %p46
        %p223 = pneg %p43
        %s224 = sand.u32 %s61, 1
        %s225 = sand.u32 %s61, 1
        %s226 = smul.addr %s225, 64
        %s227 = scalar_lea.vmem [#allocation2], %s226
        %p228 = pneg %p74
        %p229 = pneg %p71
        %p230 = pneg %p102
        %p231 = pneg %p99
        %s232 = sand.u32 %s89, 1
        %s233 = sand.u32 %s89, 1
        %s234 = smul.addr %s233, 64
        %s235 = scalar_lea.vmem [#allocation3], %s234
        %s236 = smul.u32 4, %s17
        %p237 = scmp.lt.s32.totalorder %s236, 7
        %s238 = scalar_select %p237, %s236, 7
        %s239 = smul.addr %s238, 8
        %s240 = scalar_lea.vmem %s0, %s239
        %s241 = smul.u32 4, %s17
        %s242 = smul.u32 2, %s18
        %s243 = smul.u32 4, %s17
        %s244 = smul.u32 2, %s18
        %s245 = smul.u32 4, %s17
        %v246 = vld [vmem:[%s213] sm:$0xff]
        %v247 = vld [vmem:[%s213 + $0x8] sm:$0xff]
        %v248 = vld [vmem:[%s213 + $0x10] sm:$0xff]
        %v249 = vld [vmem:[%s213 + $0x18] sm:$0xff]
        %v250 = vld [vmem:[%s213 + $0x20] sm:$0xff]
        %v251 = vld [vmem:[%s213 + $0x28] sm:$0xff]
        %v252 = vld [vmem:[%s213 + $0x30] sm:$0xff]
        %v253 = vld [vmem:[%s213 + $0x38] sm:$0xff]
        %v254 = vld [vmem:[%s240] sm:$0xff]
        %v255 = vld [vmem:[%s240 + $0x8] sm:$0xff]
        %v256 = vld [vmem:[%s240 + $0x10] sm:$0xff]
        %v257 = vld [vmem:[%s240 + $0x18] sm:$0xff]
        %v258 = vadd.f32 %v246, %v254
        %v259 = vadd.f32 %v247, %v255
        %v260 = vadd.f32 %v248, %v256
        %v261 = vadd.f32 %v249, %v257
        %v262 = vadd.f32 %v250, %v254
        %v263 = vadd.f32 %v251, %v255
        %v264 = vadd.f32 %v252, %v256
        %v265 = vadd.f32 %v253, %v257
        %266 = vst [vmem:[%s235] sm:$0xff] %v258
        %267 = vst [vmem:[%s235 + $0x8] sm:$0xff] %v259
        %268 = vst [vmem:[%s235 + $0x10] sm:$0xff] %v260
        %269 = vst [vmem:[%s235 + $0x18] sm:$0xff] %v261
        %270 = vst [vmem:[%s235 + $0x20] sm:$0xff] %v262
        %271 = vst [vmem:[%s235 + $0x28] sm:$0xff] %v263
        %272 = vst [vmem:[%s235 + $0x30] sm:$0xff] %v264
        %273 = vst [vmem:[%s235 + $0x38] sm:$0xff] %v265
        %s274 = sand.u32 %s89, 1
        %s275 = sand.u32 %s89, 1
        %s276 = smul.addr %s275, 64
        %s277 = scalar_lea.vmem [#allocation3], %s276
        // Predicated region
        $region67: #{soft_position_embed.1} parent=61 // pred_check
          %p278 = pneg %p99
        $region68: #{soft_position_embed.1} parent=61 // pred_check_branch
          %280 = sbr.rel (%p278) target = $region70
        $region69: #{soft_position_embed.1} parent=61 // pred_region
          %s281 = smul.u32 2, %s18
          %s282 = smul.u32 4, %s17
          %s283 = smul.addr %s281, 8
          %s284 = sadd.s32 %s282, %s283
          %s285 = smul.addr %s284, 8
          %s286 = scalar_lea.vmem %s2, %s285
          // Predicated region
          $region71: #{soft_position_embed.1} parent=69 // pred_check
            _
          $region72: #{soft_position_embed.1} parent=69 // pred_check_branch
            %288 = sbr.rel (0) target = $region74
          $region73: #{soft_position_embed.1} parent=69 // pred_region
            // Predicated region
            $region75: #{soft_position_embed.1} parent=73 // pred_check
              _
            $region76: #{soft_position_embed.1} parent=73 // pred_check_branch
              %290 = sbr.rel (0) target = $region78
            $region77: #{soft_position_embed.1} parent=73 // pred_region
              // Predicated region
              $region90: #{soft_position_embed.1} parent=77 // pred_check
                _
              $region91: #{soft_position_embed.1} parent=77 // pred_check_branch
                %319 = sbr.rel (0) target = $region93
              $region92: #{soft_position_embed.1} parent=77 // pred_region
                loop: start=0, step=1, limit=1
                $region94: #{soft_position_embed.1} parent=92 // loop_pre_header
                  _
                $region95: #{soft_position_embed.1} parent=92 // loop_header
                  %s321 = sphi 0, %s325
                  %p322 = scmp.ge.s32.totalorder %s321, 1
                  %s326 = sphi %s277, %s277
                  %s327 = sphi %s286, %s286
                $region96: #{soft_position_embed.1} parent=92 // loop_header_branch
                  %324 = sbr.rel (%p322) target = $region100
                $region97: #{soft_position_embed.1} parent=92 // loop_body
                  %v328 = vld [vmem:[%s326] sm:$0xff]
                  %329 = vst [vmem:[%s327] sm:$0xff] %v328
                  %v330 = vld [vmem:[%s326 + $0x8] sm:$0xff]
                  %331 = vst [vmem:[%s327 + $0x8] sm:$0xff] %v330
                  %v332 = vld [vmem:[%s326 + $0x10] sm:$0xff]
                  %333 = vst [vmem:[%s327 + $0x10] sm:$0xff] %v332
                  %v334 = vld [vmem:[%s326 + $0x18] sm:$0xff]
                  %335 = vst [vmem:[%s327 + $0x18] sm:$0xff] %v334
                  %v336 = vld [vmem:[%s326 + $0x20] sm:$0xff]
                  %337 = vst [vmem:[%s327 + $0x40] sm:$0xff] %v336
                  %v338 = vld [vmem:[%s326 + $0x28] sm:$0xff]
                  %339 = vst [vmem:[%s327 + $0x48] sm:$0xff] %v338
                  %v340 = vld [vmem:[%s326 + $0x30] sm:$0xff]
                  %341 = vst [vmem:[%s327 + $0x50] sm:$0xff] %v340
                  %v342 = vld [vmem:[%s326 + $0x38] sm:$0xff]
                  %343 = vst [vmem:[%s327 + $0x58] sm:$0xff] %v342
                $region98: #{soft_position_embed.1} parent=92 // loop_footer
                  %s325 = sadd.s32 1, %s321
                $region99: #{soft_position_embed.1} parent=92 // loop_footer_branch
                  %320 = sbr.rel target = $region95
                $region100: #{soft_position_embed.1} parent=92 // loop_exit
                  _
              $region93: #{soft_position_embed.1} parent=77 // pred_fallthru
                _
              // Predicated region
              $region101: #{soft_position_embed.1} parent=77 // pred_check
                _
              $region102: #{soft_position_embed.1} parent=77 // pred_check_branch
                %345 = sbr.rel target = $region104
              $region103: #{soft_position_embed.1} parent=77 // pred_region
                _
              $region104: #{soft_position_embed.1} parent=77 // pred_fallthru
                _
            $region78: #{soft_position_embed.1} parent=73 // pred_fallthru
              _
            // Predicated region
            $region79: #{soft_position_embed.1} parent=73 // pred_check
              _
            $region80: #{soft_position_embed.1} parent=73 // pred_check_branch
              %292 = sbr.rel target = $region82
            $region81: #{soft_position_embed.1} parent=73 // pred_region
              loop: start=0, step=1, limit=1
              $region83: #{soft_position_embed.1} parent=81 // loop_pre_header
                _
              $region84: #{soft_position_embed.1} parent=81 // loop_header
                %s295 = sphi 0, %s299
                %p296 = scmp.ge.s32.totalorder %s295, 1
                %s300 = sphi %s277, %s277
                %s301 = sphi %s286, %s286
              $region85: #{soft_position_embed.1} parent=81 // loop_header_branch
                %298 = sbr.rel (%p296) target = $region89
              $region86: #{soft_position_embed.1} parent=81 // loop_body
                %v302 = vld [vmem:[%s300] sm:$0xff]
                %303 = vst [vmem:[%s301] sm:$0xff] %v302
                %v304 = vld [vmem:[%s300 + $0x8] sm:$0xff]
                %305 = vst [vmem:[%s301 + $0x8] sm:$0xff] %v304
                %v306 = vld [vmem:[%s300 + $0x10] sm:$0xff]
                %307 = vst [vmem:[%s301 + $0x10] sm:$0xff] %v306
                %v308 = vld [vmem:[%s300 + $0x18] sm:$0xff]
                %309 = vst [vmem:[%s301 + $0x18] sm:$0xff] %v308
                %v310 = vld [vmem:[%s300 + $0x20] sm:$0xff]
                %311 = vst [vmem:[%s301 + $0x40] sm:$0xff] %v310
                %v312 = vld [vmem:[%s300 + $0x28] sm:$0xff]
                %313 = vst [vmem:[%s301 + $0x48] sm:$0xff] %v312
                %v314 = vld [vmem:[%s300 + $0x30] sm:$0xff]
                %315 = vst [vmem:[%s301 + $0x50] sm:$0xff] %v314
                %v316 = vld [vmem:[%s300 + $0x38] sm:$0xff]
                %317 = vst [vmem:[%s301 + $0x58] sm:$0xff] %v316
              $region87: #{soft_position_embed.1} parent=81 // loop_footer
                %s299 = sadd.s32 1, %s295
              $region88: #{soft_position_embed.1} parent=81 // loop_footer_branch
                %294 = sbr.rel target = $region84
              $region89: #{soft_position_embed.1} parent=81 // loop_exit
                _
            $region82: #{soft_position_embed.1} parent=73 // pred_fallthru
              _
          $region74: #{soft_position_embed.1} parent=69 // pred_fallthru
            _
          %346 = vnop
        $region70: #{soft_position_embed.1} parent=61 // pred_fallthru
          _
      $region62: #{soft_position_embed.1} parent=5 // pred_fallthru
        _
      %p347 = scmp.le.s32.totalorder 2, %s8
      // Predicated region
      $region105: #{soft_position_embed.1} parent=5 // pred_check
        %p348 = pneg %p347
      $region106: #{soft_position_embed.1} parent=5 // pred_check_branch
        %350 = sbr.rel (%p348) target = $region108
      $region107: #{soft_position_embed.1} parent=5 // pred_region
        %s351 = ssub.s32 %s8, 2
        // Predicated region
        $region109: #{soft_position_embed.1} parent=107 // pred_check
          %p352 = pneg %p105
        $region110: #{soft_position_embed.1} parent=107 // pred_check_branch
          %354 = sbr.rel (%p352) target = $region112
        $region111: #{soft_position_embed.1} parent=107 // pred_region
          %s355 = sand.u32 %s90, 1
          %s356 = sand.u32 %s90, 1
          %s357 = smul.addr %s356, 64
          %s358 = scalar_lea.vmem [#allocation3], %s357
        $region112: #{soft_position_embed.1} parent=107 // pred_fallthru
          _
      $region108: #{soft_position_embed.1} parent=5 // pred_fallthru
        _
    $region6: #{soft_position_embed.1} parent=1 // loop_footer
      %s12 = sadd.s32 1, %s8
    $region7: #{soft_position_embed.1} parent=1 // loop_footer_branch
      %7 = sbr.rel target = $region3
    $region8: #{soft_position_embed.1} parent=1 // loop_exit
      _

</llo_original>
